<compile_context>
chip_gen: v5e
topology: v5e:2x2
jax: 0.10.0
libtpu: 0.0.40
codegen_flags: <defaults>
</compile_context>

<pallas_src>
import functools

import jax
import jax.numpy as jnp
from jax import lax
from jax.experimental import pallas as pl
from jax.experimental.pallas import tpu as pltpu


# -----------------------------------------------------------------------------
# Small helpers usable inside kernels
# -----------------------------------------------------------------------------
def _ln(x, g, b, eps):
    """LayerNorm over the last dim. x:(R,D) g,b:(1,D)."""
    mean = jnp.mean(x, axis=-1, keepdims=True)
    xc = x - mean
    var = jnp.mean(xc * xc, axis=-1, keepdims=True)
    return xc * lax.rsqrt(var + eps) * g + b


# -----------------------------------------------------------------------------
# Fused transformer kernel: grid = (batch, layer)
# -----------------------------------------------------------------------------
def _transformer_kernel(bias_ref, x_ref,
                        ln1_g_ref, ln1_b_ref, qkv_w_ref, qkv_b_ref,
                        proj_w_ref, proj_b_ref, ln2_g_ref, ln2_b_ref,
                        fc1_w_ref, fc1_b_ref, fc2_w_ref, fc2_b_ref,
                        fln_g_ref, fln_b_ref,
                        o_ref, tok_ref, *, nh, hd, scale):
    l = pl.program_id(1)

    @pl.when(l == 0)
    def _():
        tok_ref[...] = x_ref[...]

    x = tok_ref[...]                                   # (S, D) f32
    S, D = x.shape
    bias = bias_ref[...]                               # (S, S) additive mask

    # ---- attention ----
    h = _ln(x, ln1_g_ref[...], ln1_b_ref[...], 1e-6)
    qkv = (jnp.dot(h.astype(jnp.bfloat16), qkv_w_ref[...],
                   preferred_element_type=jnp.float32) + qkv_b_ref[...])  # (S, 3D)
    q_all = qkv[:, :D]
    k_all = qkv[:, D:2 * D].astype(jnp.bfloat16)
    v_all = qkv[:, 2 * D:3 * D]

    # Per-lane head id; masking q/v by head avoids sub-128-lane slicing and
    # lets a single output-projection matmul consume all heads at once.
    head_id = lax.broadcasted_iota(jnp.int32, (1, D), 1) // hd
    ctx = None
    for hi in range(nh):
        m = (head_id == hi).astype(jnp.float32)                       # (1, D)
        qh = (q_all * m).astype(jnp.bfloat16)
        s = lax.dot_general(qh, k_all, (((1,), (1,)), ((), ())),
                            preferred_element_type=jnp.float32) * scale + bias
        s = s - jnp.max(s, axis=-1, keepdims=True)
        p = jnp.exp(s)
        p = p * pl.reciprocal(jnp.sum(p, axis=-1, keepdims=True), approx=True)
        oh = jnp.dot(p.astype(jnp.bfloat16), (v_all * m).astype(jnp.bfloat16),
                     preferred_element_type=jnp.float32)              # (S, D)
        ctx = oh if ctx is None else ctx + oh
    attn = (jnp.dot(ctx.astype(jnp.bfloat16), proj_w_ref[...],
                    preferred_element_type=jnp.float32) + proj_b_ref[...])
    x = x + attn

    # ---- MLP ----
    h2 = _ln(x, ln2_g_ref[...], ln2_b_ref[...], 1e-6)
    f = (jnp.dot(h2.astype(jnp.bfloat16), fc1_w_ref[...],
                 preferred_element_type=jnp.float32) + fc1_b_ref[...])
    f = jax.nn.gelu(f)   # tanh approximation (see TODO at top of file)
    f = (jnp.dot(f.astype(jnp.bfloat16), fc2_w_ref[...],
                 preferred_element_type=jnp.float32) + fc2_b_ref[...])
    x = x + f
    tok_ref[...] = x

    @pl.when(l == pl.num_programs(1) - 1)
    def _():
        o_ref[...] = _ln(x, fln_g_ref[...], fln_b_ref[...], 1e-6)


def transformer_fused(tp, x, bias, num_heads):
    """x: (B, S, D) f32 padded tokens, bias: (S, S) additive mask."""
    B, S, D = x.shape
    layers = tp["layers"]
    L = len(layers)
    mlp = layers[0]["fc1_w"].shape[1]
    hd = D // num_heads

    def svec(name, width):
        return jnp.stack([lyr[name] for lyr in layers]).reshape(L, 1, width)

    ln1_g, ln1_b = svec("ln1_g", D), svec("ln1_b", D)
    ln2_g, ln2_b = svec("ln2_g", D), svec("ln2_b", D)
    qkv_b, proj_b = svec("qkv_b", 3 * D), svec("proj_b", D)
    fc1_b, fc2_b = svec("fc1_b", mlp), svec("fc2_b", D)
    qkv_w = jnp.stack([lyr["qkv_w"] for lyr in layers]).astype(jnp.bfloat16)
    proj_w = jnp.stack([lyr["proj_w"] for lyr in layers]).astype(jnp.bfloat16)
    fc1_w = jnp.stack([lyr["fc1_w"] for lyr in layers]).astype(jnp.bfloat16)
    fc2_w = jnp.stack([lyr["fc2_w"] for lyr in layers]).astype(jnp.bfloat16)
    fln_g = tp["final_ln_g"].reshape(1, D)
    fln_b = tp["final_ln_b"].reshape(1, D)

    kernel = functools.partial(_transformer_kernel, nh=num_heads, hd=hd,
                               scale=1.0 / (hd ** 0.5))
    return pl.pallas_call(
        kernel,
        out_shape=jax.ShapeDtypeStruct((B, S, D), jnp.float32),
        grid=(B, L),
        in_specs=[
            pl.BlockSpec((S, S), lambda b, l: (0, 0)),              # bias
            pl.BlockSpec((None, S, D), lambda b, l: (b, 0, 0)),     # tokens
            pl.BlockSpec((None, 1, D), lambda b, l: (l, 0, 0)),     # ln1_g
            pl.BlockSpec((None, 1, D), lambda b, l: (l, 0, 0)),     # ln1_b
            pl.BlockSpec((None, D, 3 * D), lambda b, l: (l, 0, 0)),  # qkv_w
            pl.BlockSpec((None, 1, 3 * D), lambda b, l: (l, 0, 0)),  # qkv_b
            pl.BlockSpec((None, D, D), lambda b, l: (l, 0, 0)),     # proj_w
            pl.BlockSpec((None, 1, D), lambda b, l: (l, 0, 0)),     # proj_b
            pl.BlockSpec((None, 1, D), lambda b, l: (l, 0, 0)),     # ln2_g
            pl.BlockSpec((None, 1, D), lambda b, l: (l, 0, 0)),     # ln2_b
            pl.BlockSpec((None, D, mlp), lambda b, l: (l, 0, 0)),   # fc1_w
            pl.BlockSpec((None, 1, mlp), lambda b, l: (l, 0, 0)),   # fc1_b
            pl.BlockSpec((None, mlp, D), lambda b, l: (l, 0, 0)),   # fc2_w
            pl.BlockSpec((None, 1, D), lambda b, l: (l, 0, 0)),     # fc2_b
            pl.BlockSpec((1, D), lambda b, l: (0, 0)),              # final ln g
            pl.BlockSpec((1, D), lambda b, l: (0, 0)),              # final ln b
        ],
        out_specs=pl.BlockSpec((None, S, D), lambda b, l: (b, 0, 0)),
        scratch_shapes=[pltpu.VMEM((S, D), jnp.float32)],
        compiler_params=pltpu.CompilerParams(
            dimension_semantics=("parallel", "arbitrary")),
    )(bias, x, ln1_g, ln1_b, qkv_w, qkv_b, proj_w, proj_b,
      ln2_g, ln2_b, fc1_w, fc1_b, fc2_w, fc2_b, fln_g, fln_b)


# -----------------------------------------------------------------------------
# Fused conv(im2col matmul) + GroupNorm + ReLU kernel (one sample per grid step)
# -----------------------------------------------------------------------------
def _conv_gn_relu_kernel(p_ref, w_ref, b_ref, g_ref, be_ref, a_ref, o_ref,
                         *, inv_cnt, eps):
    p = p_ref[...].astype(jnp.bfloat16)                   # (CKK, HW)
    y = (jnp.dot(w_ref[...], p, preferred_element_type=jnp.float32)
         + b_ref[...])                                    # (C, HW)
    A = a_ref[...]                                        # (C, C) group aggregation
    s1 = jnp.dot(A, y, preferred_element_type=jnp.float32)
    s2 = jnp.dot(A, y * y, preferred_element_type=jnp.float32)
    mean = jnp.sum(s1, axis=1, keepdims=True) * inv_cnt   # (C, 1)
    var = jnp.sum(s2, axis=1, keepdims=True) * inv_cnt - mean * mean
    yn = (y - mean) * lax.rsqrt(var + eps)
    o_ref[...] = jnp.maximum(yn * g_ref[...] + be_ref[...], 0.0)


def conv_gn_relu_stage(p_cols, w2, b, gamma, beta, group_mat, groups, eps=1e-5):
    """p_cols:(BN,CKK,HW) w2:(C,CKK) bf16 -> (BN,C,HW) f32 (conv+GN+ReLU)."""
    BN, CKK, HW = p_cols.shape
    Cout = w2.shape[0]
    Cg = Cout // groups
    kernel = functools.partial(_conv_gn_relu_kernel,
                               inv_cnt=1.0 / float(Cg * HW), eps=eps)
    return pl.pallas_call(
        kernel,
        out_shape=jax.ShapeDtypeStruct((BN, Cout, HW), jnp.float32),
        grid=(BN,),
        in_specs=[
            pl.BlockSpec((None, CKK, HW), lambda n: (n, 0, 0)),
            pl.BlockSpec((Cout, CKK), lambda n: (0, 0)),
            pl.BlockSpec((Cout, 1), lambda n: (0, 0)),
            pl.BlockSpec((Cout, 1), lambda n: (0, 0)),
            pl.BlockSpec((Cout, 1), lambda n: (0, 0)),
            pl.BlockSpec((Cout, Cout), lambda n: (0, 0)),
        ],
        out_specs=pl.BlockSpec((None, Cout, HW), lambda n: (n, 0, 0)),
        compiler_params=pltpu.CompilerParams(dimension_semantics=("parallel",)),
    )(p_cols, w2, b, gamma, beta, group_mat)


# -----------------------------------------------------------------------------
# Fused 1x1 embed conv + obs projection + positional add
# -----------------------------------------------------------------------------
def _embed_proj_kernel(x_ref, we_ref, be_ref, wo_ref, bo_ref, pos_ref, o_ref):
    x = x_ref[...].astype(jnp.bfloat16)                   # (HW, Cin)
    y = (jnp.dot(x, we_ref[...], preferred_element_type=jnp.float32)
         + be_ref[...])                                   # (HW, Ce)
    t = jnp.dot(y.astype(jnp.bfloat16), wo_ref[...],
                preferred_element_type=jnp.float32)       # (HW, D)
    o_ref[...] = t + bo_ref[...] + pos_ref[...]


def embed_obs_project(x, we, be, wo, bo, pos):
    """x:(BN,HW,Cin), we:(Cin,Ce) bf16, wo:(Ce,D) bf16 -> (BN,HW,D)."""
    BN, HW, Cin = x.shape
    Ce = we.shape[1]
    D = wo.shape[1]
    return pl.pallas_call(
        _embed_proj_kernel,
        out_shape=jax.ShapeDtypeStruct((BN, HW, D), jnp.float32),
        grid=(BN,),
        in_specs=[
            pl.BlockSpec((None, HW, Cin), lambda n: (n, 0, 0)),
            pl.BlockSpec((Cin, Ce), lambda n: (0, 0)),
            pl.BlockSpec((1, Ce), lambda n: (0, 0)),
            pl.BlockSpec((Ce, D), lambda n: (0, 0)),
            pl.BlockSpec((1, D), lambda n: (0, 0)),
            pl.BlockSpec((HW, D), lambda n: (0, 0)),
        ],
        out_specs=pl.BlockSpec((None, HW, D), lambda n: (n, 0, 0)),
        compiler_params=pltpu.CompilerParams(dimension_semantics=("parallel",)),
    )(x, we, be, wo, bo, pos)


# -----------------------------------------------------------------------------
# Task projection + positional add
# -----------------------------------------------------------------------------
def _task_proj_kernel(x_ref, w_ref, b_ref, pos_ref, o_ref):
    o_ref[...] = (jnp.dot(x_ref[...].astype(jnp.bfloat16), w_ref[...],
                          preferred_element_type=jnp.float32)
                  + b_ref[...] + pos_ref[...])


def task_project(x, w, b, pos):
    """x:(B,L,K) f32, w:(K,D) bf16, b:(1,D), pos:(L,D) -> (B,L,D)."""
    B, L, K = x.shape
    D = w.shape[1]
    return pl.pallas_call(
        _task_proj_kernel,
        out_shape=jax.ShapeDtypeStruct((B, L, D), jnp.float32),
        grid=(B,),
        in_specs=[
            pl.BlockSpec((None, L, K), lambda b_: (b_, 0, 0)),
            pl.BlockSpec((K, D), lambda b_: (0, 0)),
            pl.BlockSpec((1, D), lambda b_: (0, 0)),
            pl.BlockSpec((L, D), lambda b_: (0, 0)),
        ],
        out_specs=pl.BlockSpec((None, L, D), lambda b_: (b_, 0, 0)),
        compiler_params=pltpu.CompilerParams(dimension_semantics=("parallel",)),
    )(x, w, b, pos)


# -----------------------------------------------------------------------------
# XLA glue: im2col, group aggregation matrix, SmallStem driver
# -----------------------------------------------------------------------------
def im2col(x, kh, kw, stride, padding):
    """x:(N,C,H,W) -> patches:(N, C*kh*kw, Ho*Wo), Ho, Wo."""
    N, C, H, W = x.shape
    xp = jnp.pad(x, ((0, 0), (0, 0), (padding, padding), (padding, padding)))
    Ho = (H + 2 * padding - kh) // stride + 1
    Wo = (W + 2 * padding - kw) // stride + 1
    slices = []
    for i in range(kh):
        for j in range(kw):
            slices.append(xp[:, :,
                             i:i + stride * (Ho - 1) + 1:stride,
                             j:j + stride * (Wo - 1) + 1:stride])
    p = jnp.stack(slices, axis=2)                         # (N, C, kh*kw, Ho, Wo)
    return p.reshape(N, C * kh * kw, Ho * Wo), Ho, Wo


def group_matrix(C, groups):
    Cg = C // groups
    ids = jnp.arange(C) // Cg
    return (ids[:, None] == ids[None, :]).astype(jnp.float32)


def small_stem_forward(p, x, cfg_it):
    """4x fused [conv(k3,s2,p1) + GroupNorm + ReLU]; returns features + enc_fts."""
    groups = cfg_it["groups"]
    BN = x.shape[0]
    enc_fts = []
    Ho = Wo = None
    for i, _ in enumerate(cfg_it["features"]):
        w = p[f"conv{i}_w"]
        if w.shape[1] != x.shape[1]:
            # Reference concatenates zero channels; they contribute nothing,
            # so slice the weight to the real input channels instead.
            w = w[:, :x.shape[1]]
        Cout = w.shape[0]
        cols, Ho, Wo = im2col(x, 3, 3, stride=2, padding=1)
        y = conv_gn_relu_stage(
            cols,
            w.reshape(Cout, -1).astype(jnp.bfloat16),
            p[f"conv{i}_b"].reshape(Cout, 1),
            p[f"gn{i}_g"].reshape(Cout, 1),
            p[f"gn{i}_b"].reshape(Cout, 1),
            group_matrix(Cout, groups),
            groups)
        x = y.reshape(BN, Cout, Ho, Wo)
        enc_fts.append(x)
    return x, enc_fts, Ho, Wo


# -----------------------------------------------------------------------------
# OctoBackbone config / params / forward
# -----------------------------------------------------------------------------
def small_config():
    return {
        "image_tokenizer_kwargs": {
            "patch_size": 16, "features": (8, 16, 32, 64),
            "num_features": 64, "in_channels": 6, "groups": 4,
        },
        "language_tokenizer_kwargs": {"max_length": 8, "lang_dim": 768},
        "transformer_kwargs": {"input_dim": 128, "mlp_dim": 256,
                               "num_attention_heads": 2, "num_layers": 2},
        "latent_im_size": 4,        # (32/16) * (32/16)
        "max_horizon": 2,
    }


def init_params(key, cfg):
    keys = iter(jax.random.split(key, 256))

    def nrm(shape, std=0.02):
        return jax.random.normal(next(keys), shape, jnp.float32) * std

    D = cfg["transformer_kwargs"]["input_dim"]
    it = cfg["image_tokenizer_kwargs"]
    nf, cin = it["num_features"], it["in_channels"]

    stem = {}
    prev = cin
    for i, f in enumerate(it["features"]):
        stem[f"conv{i}_w"] = nrm((f, prev, 3, 3))
        stem[f"conv{i}_b"] = jnp.zeros((f,), jnp.float32)
        stem[f"gn{i}_g"] = jnp.ones((f,), jnp.float32)
        stem[f"gn{i}_b"] = jnp.zeros((f,), jnp.float32)
        prev = f
    stem["embed_w"] = nrm((nf, prev, 1, 1))
    stem["embed_b"] = jnp.zeros((nf,), jnp.float32)

    L = cfg["language_tokenizer_kwargs"]["max_length"]
    Hmax, LIS = cfg["max_horizon"], cfg["latent_im_size"]
    mlp = cfg["transformer_kwargs"]["mlp_dim"]

    layers = []
    for _ in range(cfg["transformer_kwargs"]["num_layers"]):
        layers.append({
            "ln1_g": jnp.ones((D,), jnp.float32), "ln1_b": jnp.zeros((D,), jnp.float32),
            "qkv_w": nrm((D, 3 * D)), "qkv_b": jnp.zeros((3 * D,), jnp.float32),
            "proj_w": nrm((D, D)), "proj_b": jnp.zeros((D,), jnp.float32),
            "ln2_g": jnp.ones((D,), jnp.float32), "ln2_b": jnp.zeros((D,), jnp.float32),
            "fc1_w": nrm((D, mlp)), "fc1_b": jnp.zeros((mlp,), jnp.float32),
            "fc2_w": nrm((mlp, D)), "fc2_b": jnp.zeros((D,), jnp.float32),
        })

    return {
        "stem": stem,
        "task_proj_w": nrm((cfg["language_tokenizer_kwargs"]["lang_dim"], D)),
        "task_proj_b": jnp.zeros((D,), jnp.float32),
        "obs_proj_w": nrm((nf, D)),
        "obs_proj_b": jnp.zeros((D,), jnp.float32),
        "task_pos": nrm((1, L, D), std=1.0),          # torch.randn
        "obs_pos": nrm((1, Hmax, LIS, D), std=1.0),
        "readout_pos": nrm((1, Hmax, 1, D), std=1.0),
        "transformer": {
            "layers": layers,
            "final_ln_g": jnp.ones((D,), jnp.float32),
            "final_ln_b": jnp.zeros((D,), jnp.float32),
        },
    }


def synth_task_tokens(texts, max_length, dim):
    # TODO(synk): replaces pretrained language-model tokenizer with
    # deterministic hash-seeded embeddings of shape (B, max_length, 768).
    base = jax.random.PRNGKey(1234)
    rows = []
    for t in texts:
        h = 0
        for i, c in enumerate(t):
            h = (h * 131 + ord(c) * (i + 1)) % (2 ** 31 - 1)
        rows.append(jax.random.normal(jax.random.fold_in(base, h),
                                      (max_length, dim), jnp.float32) * 0.02)
    return jnp.stack(rows, axis=0)


def gen_attention_mask(nt, nv, nr):
    n = nt + nv + nr
    mask = jnp.zeros((n, n), dtype=bool)
    mask = mask.at[:nt, :nt].set(True)
    mask = mask.at[nt:nt + nv, :nt + nv].set(True)
    mask = mask.at[n - nr:, :].set(True)
    return mask


def octo_backbone_forward(params, text_input, rgb_obs, cfg):
    B, Ncam = rgb_obs.shape[:2]
    D = cfg["transformer_kwargs"]["input_dim"]
    L = cfg["language_tokenizer_kwargs"]["max_length"]
    lang_dim = cfg["language_tokenizer_kwargs"]["lang_dim"]
    nh = cfg["transformer_kwargs"]["num_attention_heads"]

    # ---- task tokens: projection + positional add (fused kernel) ----
    task_raw = synth_task_tokens(text_input, L, lang_dim)          # (B, L, 768)
    tt = task_project(task_raw,
                      params["task_proj_w"].astype(jnp.bfloat16),
                      params["task_proj_b"].reshape(1, D),
                      params["task_pos"][0])                        # (B, L, D)

    # ---- image tokens: fused conv+GN+ReLU stem, then fused embed+projection ----
    rgb = rgb_obs.reshape(B * Ncam, *rgb_obs.shape[2:])             # (BN, 3, H, W)
    x4, enc_fts, new_h, new_w = small_stem_forward(
        params["stem"], rgb, cfg["image_tokenizer_kwargs"])
    BN, Flast = x4.shape[:2]
    nf = params["stem"]["embed_w"].shape[0]
    embed_w = params["stem"]["embed_w"].reshape(nf, Flast).T.astype(jnp.bfloat16)
    ot = embed_obs_project(
        x4.reshape(BN, Flast, new_h * new_w).transpose(0, 2, 1),    # (BN, HW, F)
        embed_w,
        params["stem"]["embed_b"].reshape(1, nf),
        params["obs_proj_w"].astype(jnp.bfloat16),
        params["obs_proj_b"].reshape(1, D),
        params["obs_pos"][0, 0])                                    # (HW, D)
    ot = ot.reshape(B, Ncam * new_h * new_w, D)

    # ---- readout tokens ----
    rt = jnp.broadcast_to(params["readout_pos"][:, 0], (B, 1, D))

    all_tokens = jnp.concatenate([tt, ot, rt], axis=1)              # (B, S_real, D)
    nt, nv, nr = tt.shape[1], ot.shape[1], rt.shape[1]
    S_real = nt + nv + nr
    S_pad = ((S_real + 7) // 8) * 8                                 # sublane-align seq
    tokens = jnp.pad(all_tokens, ((0, 0), (0, S_pad - S_real), (0, 0)))

    mask = gen_attention_mask(nt, nv, nr)
    mask_p = jnp.zeros((S_pad, S_pad), dtype=bool).at[:S_real, :S_real].set(mask)
    bias = jnp.where(mask_p, 0.0, -1e9).astype(jnp.float32)

    out = transformer_fused(params["transformer"], tokens, bias, nh)[:, :S_real]

    task_embeddings = out[:, :nt]
    visual_embeddings = out[:, nt:nt + nv].reshape(B, Ncam, new_h * new_w, D)
    readout_embeddings = out[:, nt + nv:]

    return {
        "task_embeddings": task_embeddings,
        "visual_embeddings": visual_embeddings,
        "readout_embeddings": readout_embeddings,
        "enc_fts": enc_fts,
        "new_im_height": new_h,
        "new_im_width": new_w,
    }


# -----------------------------------------------------------------------------
if __name__ == "__main__":
    cfg = small_config()
    key = jax.random.PRNGKey(0)
    pkey, dkey = jax.random.split(key)
    params = init_params(pkey, cfg)

    # rgb_obs: (batch=2, n_cameras=1, C=3, H=32, W=32)
    rgb_obs = jax.random.normal(dkey, (2, 1, 3, 32, 32), jnp.float32)
    text_input = ["pick up the red block", "open the drawer"]

    out = octo_backbone_forward(params, text_input, rgb_obs, cfg)
    jax.block_until_ready((out["task_embeddings"], out["visual_embeddings"],
                           out["readout_embeddings"], out["enc_fts"]))

    assert out["task_embeddings"].shape == (2, 8, 128)
    assert out["visual_embeddings"].shape == (2, 1, 4, 128)
    assert out["readout_embeddings"].shape == (2, 1, 128)
    assert out["new_im_height"] == 2 and out["new_im_width"] == 2
    assert bool(jnp.all(jnp.isfinite(out["task_embeddings"])))
    assert bool(jnp.all(jnp.isfinite(out["visual_embeddings"])))
    assert bool(jnp.all(jnp.isfinite(out["readout_embeddings"])))
    print("KERNEL_OK")
</pallas_src>

<mosaic_0001>
module attributes {stable_mosaic.version = 11 : i64} {
  func.func @_task_proj_kernel(%arg0: i32, %arg1: memref<1x8x768xf32, #tpu.memory_space<vmem>>, %arg2: memref<768x128xbf16, #tpu.memory_space<vmem>>, %arg3: memref<1x128xf32, #tpu.memory_space<vmem>>, %arg4: memref<8x128xf32, #tpu.memory_space<vmem>>, %arg5: memref<1x8x128xf32, #tpu.memory_space<vmem>>) attributes {dimension_semantics = [#tpu.dimension_semantics<parallel>], iteration_bounds = array<i64: 2>, scalar_prefetch = 0 : i64, scratch_operands = 0 : i64, tpu.core_type = #tpu.core_type<tc>, window_params = [{transform_indices = @transform_0, window_bounds = array<i64: 1, 8, 768>}, {pipeline_mode = #tpu.pipeline_mode<synchronous>, transform_indices = @transform_1, window_bounds = array<i64: 768, 128>}, {pipeline_mode = #tpu.pipeline_mode<synchronous>, transform_indices = @transform_2, window_bounds = array<i64: 1, 128>}, {pipeline_mode = #tpu.pipeline_mode<synchronous>, transform_indices = @transform_3, window_bounds = array<i64: 8, 128>}, {transform_indices = @transform_4, window_bounds = array<i64: 1, 8, 128>}]} {
    %c0 = arith.constant 0 : index
    %c0_0 = arith.constant 0 : index
    %c0_1 = arith.constant 0 : index
    %0 = vector.load %arg1[%c0, %c0_0, %c0_1] : memref<1x8x768xf32, #tpu.memory_space<vmem>>, vector<1x8x768xf32>
    %1 = vector.shape_cast %0 : vector<1x8x768xf32> to vector<8x768xf32>
    %2 = arith.truncf %1 : vector<8x768xf32> to vector<8x768xbf16>
    %c0_2 = arith.constant 0 : index
    %c0_3 = arith.constant 0 : index
    %3 = vector.load %arg2[%c0_2, %c0_3] : memref<768x128xbf16, #tpu.memory_space<vmem>>, vector<768x128xbf16>
    %cst = arith.constant dense<0.000000e+00> : vector<8x128xf32>
    %4 = tpu.matmul %2, %3, %cst {dimension_numbers = #tpu.dot_dimension_numbers<[1], [0], [0], [1], [0, 0, 1, 1], [], []>} : vector<8x768xbf16>, vector<768x128xbf16>, vector<8x128xf32> -> vector<8x128xf32>
    %c0_4 = arith.constant 0 : index
    %c0_5 = arith.constant 0 : index
    %5 = vector.load %arg3[%c0_4, %c0_5] : memref<1x128xf32, #tpu.memory_space<vmem>>, vector<1x128xf32>
    %6 = vector.broadcast %5 : vector<1x128xf32> to vector<8x128xf32>
    %7 = arith.addf %4, %6 : vector<8x128xf32>
    %c0_6 = arith.constant 0 : index
    %c0_7 = arith.constant 0 : index
    %8 = vector.load %arg4[%c0_6, %c0_7] : memref<8x128xf32, #tpu.memory_space<vmem>>, vector<8x128xf32>
    %9 = arith.addf %7, %8 : vector<8x128xf32>
    %c0_8 = arith.constant 0 : index
    %c0_9 = arith.constant 0 : index
    %c0_10 = arith.constant 0 : index
    %10 = vector.load %arg5[%c0_8, %c0_9, %c0_10] : memref<1x8x128xf32, #tpu.memory_space<vmem>>, vector<1x8x128xf32>
    %11 = vector.shape_cast %10 : vector<1x8x128xf32> to vector<8x128xf32>
    %12 = vector.shape_cast %9 : vector<8x128xf32> to vector<1x8x128xf32>
    tpu.vector_store %arg5[%c0_8, %c0_9, %c0_10], %12 {strides = array<i32>} : memref<1x8x128xf32, #tpu.memory_space<vmem>>, vector<1x8x128xf32>,
    return
  }
  func.func @transform_0(%arg0: i32) -> (i32, i32, i32) {
    %c0_i32 = arith.constant 0 : i32
    %c0_i32_0 = arith.constant 0 : i32
    %c0_i32_1 = arith.constant 0 : i32
    return %arg0, %c0_i32, %c0_i32_0 : i32, i32, i32
  }
  func.func @transform_1(%arg0: i32) -> (i32, i32) {
    %c0_i32 = arith.constant 0 : i32
    %c0_i32_0 = arith.constant 0 : i32
    %c0_i32_1 = arith.constant 0 : i32
    return %c0_i32, %c0_i32_0 : i32, i32
  }
  func.func @transform_2(%arg0: i32) -> (i32, i32) {
    %c0_i32 = arith.constant 0 : i32
    %c0_i32_0 = arith.constant 0 : i32
    %c0_i32_1 = arith.constant 0 : i32
    return %c0_i32, %c0_i32_0 : i32, i32
  }
  func.func @transform_3(%arg0: i32) -> (i32, i32) {
    %c0_i32 = arith.constant 0 : i32
    %c0_i32_0 = arith.constant 0 : i32
    %c0_i32_1 = arith.constant 0 : i32
    return %c0_i32, %c0_i32_0 : i32, i32
  }
  func.func @transform_4(%arg0: i32) -> (i32, i32, i32) {
    %c0_i32 = arith.constant 0 : i32
    %c0_i32_0 = arith.constant 0 : i32
    %c0_i32_1 = arith.constant 0 : i32
    return %arg0, %c0_i32, %c0_i32_0 : i32, i32, i32
  }
}

</mosaic_0001>

<llo_original>
// kernel: tpu_custom_call.1
$region0: #{tpu_custom_call.1}
  #allocation0 [shape = 'u32[]', space=smem, size = 0x4, offset = 0x4, fixed_abs, tag = 'smem constant byte address 0x4 - core index']
  #allocation1 [shape = 'u32[72,128]{1,0:T(1,128)}', space=vmem, size = 0x9000, scoped, tag = 'internal scratch']
  %s0 = inlined_call_operand.hbm [shape: f32[2,8,768], index: 0, kind: input, shape index: {}]
  %s1 = inlined_call_operand.hbm [shape: bf16[768,128], index: 1, kind: input, shape index: {}]
  %s2 = inlined_call_operand.vmem [shape: f32[1,128], index: 2, kind: input, shape index: {}]
  %s3 = inlined_call_operand.hbm [shape: f32[8,128], index: 3, kind: input, shape index: {}]
  %s4 = inlined_call_operand.hbm [shape: f32[2,8,128], index: 4, kind: output, shape index: {}]
  %s5 = sld [smem:[#allocation0]]
  $region61: #{tpu_custom_call.1} parent=0
    _
  %s7 = ssub.s32 1, %s5
  %s8 = scalar_select 0, %s7, %s5
  $region1: #{tpu_custom_call.1} parent=0
    #allocation2 [shape = 'u8[49152]{0}', space=vmem, size = 0xc000, scoped, tag = 'input window, operand 0']
    #allocation3 [shape = 's32[2]{0}', space=sflag, size = 0x8, scoped, tag = 'scoped memory for tpu_custom_call.1']
    #allocation4 [shape = 's32[2]{0}', space=sflag, size = 0x8, scoped, tag = 'scoped memory for tpu_custom_call.1']
    #allocation5 [shape = 'u8[196608]{0}', space=vmem, size = 0x30000, scoped, tag = 'input window, operand 1, single buffered']
    #allocation6 [shape = 's32[1]{0}', space=sflag, size = 0x4, scoped, tag = 'scoped memory for tpu_custom_call.1']
    #allocation7 [shape = 'u8[4096]{0}', space=vmem, size = 0x1000, scoped, tag = 'input window, operand 3, single buffered']
    #allocation8 [shape = 'u8[8192]{0}', space=vmem, size = 0x2000, scoped, tag = 'output window, operand 0']
    %9 = vsyncpa [#allocation3], 0
    %s10 = scalar_lea.sflag [#allocation3], 1
    %11 = vsyncpa %s10, 0
    %12 = vsyncpa [#allocation6], 0
    %13 = vsyncpa [#allocation4], 0
    %s14 = scalar_lea.sflag [#allocation4], 1
    %15 = vsyncpa %s14, 0
    loop: start=0, step=1, limit=4
    $region2: #{tpu_custom_call.1} parent=1 // loop_pre_header
      _
    $region3: #{tpu_custom_call.1} parent=1 // loop_header
      %s17 = sphi 0, %s21
      %p18 = scmp.ge.s32.totalorder %s17, 4
      %s27 = sphi 0, %s29
      %s30 = sphi 0, %s27
      %s31 = sphi 0, %s30
      %s47 = sphi 0, %s31
      %s51 = sphi 0, %s51
      %s53 = sphi 0, %s51
      %s54 = sphi 0, %s53
      %s68 = sphi 0, %s54
      %s72 = sphi 0, %s72
      %s74 = sphi 0, %s72
      %s75 = sphi 0, %s74
      %s89 = sphi 0, %s75
      %s93 = sphi 0, %s93
      %s95 = sphi 0, %s93
      %s96 = sphi 0, %s95
      %s110 = sphi 0, %s96
      %s116 = sphi 0, %s118
      %s119 = sphi 0, %s116
      %s120 = sphi 0, %s119
      %s136 = sphi 0, %s120
    $region4: #{tpu_custom_call.1} parent=1 // loop_header_branch
      %20 = sbr.rel (%p18) target = $region8
    $region5: #{tpu_custom_call.1} parent=1 // loop_body
      %s22 = ssub.s32 %s17, 1
      %s23 = ssub.s32 %s17, 2
      %s24 = sadd.s32 %s17, 1
      %s25 = ssub.s32 %s17, %s24
      %p26 = scmp.eq.s32.totalorder %s25, 0
      %s28 = sadd.s32 %s27, 1
      %s29 = scalar_select %p26, %s27, %s28
      %p32 = pneg %p26
      %p33 = scmp.eq.s32.totalorder %s17, 1
      %p34 = por %p32, %p33
      %p35 = scmp.ne.s32.totalorder %s27, %s30
      %p36 = scmp.eq.s32.totalorder %s17, 0
      %p37 = por %p35, %p36
      %p38 = scmp.ne.s32.totalorder %s27, %s30
      %p39 = scmp.eq.s32.totalorder %s22, 1
      %p40 = por %p38, %p39
      %p41 = scmp.ne.s32.totalorder %s30, %s31
      %p42 = scmp.eq.s32.totalorder %s22, 0
      %p43 = por %p41, %p42
      %p44 = scmp.ne.s32.totalorder %s30, %s31
      %p45 = scmp.eq.s32.totalorder %s23, 1
      %p46 = por %p44, %p45
      %p48 = scmp.ne.s32.totalorder %s31, %s47
      %p49 = scmp.eq.s32.totalorder %s23, 0
      %p50 = por %p48, %p49
      %s52 = sadd.s32 %s51, 1
      %p55 = scmp.eq.s32.totalorder %s17, 1
      %p56 = scmp.ne.s32.totalorder %s51, %s53
      %p57 = scmp.eq.s32.totalorder %s17, 0
      %p58 = por %p56, %p57
      %p59 = scmp.ne.s32.totalorder %s51, %s53
      %p60 = scmp.eq.s32.totalorder %s22, 1
      %p61 = por %p59, %p60
      %p62 = scmp.ne.s32.totalorder %s53, %s54
      %p63 = scmp.eq.s32.totalorder %s22, 0
      %p64 = por %p62, %p63
      %p65 = scmp.ne.s32.totalorder %s53, %s54
      %p66 = scmp.eq.s32.totalorder %s23, 1
      %p67 = por %p65, %p66
      %p69 = scmp.ne.s32.totalorder %s54, %s68
      %p70 = scmp.eq.s32.totalorder %s23, 0
      %p71 = por %p69, %p70
      %s73 = sadd.s32 %s72, 1
      %p76 = scmp.eq.s32.totalorder %s17, 1
      %p77 = scmp.ne.s32.totalorder %s72, %s74
      %p78 = scmp.eq.s32.totalorder %s17, 0
      %p79 = por %p77, %p78
      %p80 = scmp.ne.s32.totalorder %s72, %s74
      %p81 = scmp.eq.s32.totalorder %s22, 1
      %p82 = por %p80, %p81
      %p83 = scmp.ne.s32.totalorder %s74, %s75
      %p84 = scmp.eq.s32.totalorder %s22, 0
      %p85 = por %p83, %p84
      %p86 = scmp.ne.s32.totalorder %s74, %s75
      %p87 = scmp.eq.s32.totalorder %s23, 1
      %p88 = por %p86, %p87
      %p90 = scmp.ne.s32.totalorder %s75, %s89
      %p91 = scmp.eq.s32.totalorder %s23, 0
      %p92 = por %p90, %p91
      %s94 = sadd.s32 %s93, 1
      %p97 = scmp.eq.s32.totalorder %s17, 1
      %p98 = scmp.ne.s32.totalorder %s93, %s95
      %p99 = scmp.eq.s32.totalorder %s17, 0
      %p100 = por %p98, %p99
      %p101 = scmp.ne.s32.totalorder %s93, %s95
      %p102 = scmp.eq.s32.totalorder %s22, 1
      %p103 = por %p101, %p102
      %p104 = scmp.ne.s32.totalorder %s95, %s96
      %p105 = scmp.eq.s32.totalorder %s22, 0
      %p106 = por %p104, %p105
      %p107 = scmp.ne.s32.totalorder %s95, %s96
      %p108 = scmp.eq.s32.totalorder %s23, 1
      %p109 = por %p107, %p108
      %p111 = scmp.ne.s32.totalorder %s96, %s110
      %p112 = scmp.eq.s32.totalorder %s23, 0
      %p113 = por %p111, %p112
      %s114 = ssub.s32 %s17, %s24
      %p115 = scmp.eq.s32.totalorder %s114, 0
      %s117 = sadd.s32 %s116, 1
      %s118 = scalar_select %p115, %s116, %s117
      %p121 = pneg %p115
      %p122 = scmp.eq.s32.totalorder %s17, 1
      %p123 = por %p121, %p122
      %p124 = scmp.ne.s32.totalorder %s116, %s119
      %p125 = scmp.eq.s32.totalorder %s17, 0
      %p126 = por %p124, %p125
      %p127 = scmp.ne.s32.totalorder %s116, %s119
      %p128 = scmp.eq.s32.totalorder %s22, 1
      %p129 = por %p127, %p128
      %p130 = scmp.ne.s32.totalorder %s119, %s120
      %p131 = scmp.eq.s32.totalorder %s22, 0
      %p132 = por %p130, %p131
      %p133 = scmp.ne.s32.totalorder %s119, %s120
      %p134 = scmp.eq.s32.totalorder %s23, 1
      %p135 = por %p133, %p134
      %p137 = scmp.ne.s32.totalorder %s120, %s136
      %p138 = scmp.eq.s32.totalorder %s23, 0
      %p139 = por %p137, %p138
      %p140 = scmp.le.s32.totalorder 1, %s17
      %p141 = scmp.lt.s32.totalorder %s17, 3
      %p142 = pnand %p140, %p141
      %p143 = pneg %p142
      // Predicated region
      $region9: #{tpu_custom_call.1} parent=5 // pred_check
        _
      $region10: #{tpu_custom_call.1} parent=5 // pred_check_branch
        %145 = sbr.rel (%p142) target = $region12
      $region11: #{tpu_custom_call.1} parent=5 // pred_region
        %s146 = ssub.s32 %s17, 1
        // Predicated region
        $region13: #{tpu_custom_call.1} parent=11 // pred_check
          %p147 = pneg %p64
        $region14: #{tpu_custom_call.1} parent=11 // pred_check_branch
          %149 = sbr.rel (%p147) target = $region16
        $region15: #{tpu_custom_call.1} parent=11 // pred_region
          %151 = vsyncadd [#allocation6], 0
          %s152 = sshll.u32 %s1, 4
          %s153 = int_to_ptr.hbm [resolvable:$true] %s152
          %s154 = sshll.u32 [#allocation5], 4
          %s155 = int_to_ptr.vmem [resolvable:$true] %s154
          %160 = dma.hbm_to_vmem [thread:$0]  %s153, 6144, %s155, [#allocation6], 64, 64, 4
        $region16: #{tpu_custom_call.1} parent=11 // pred_fallthru
          _
        // Predicated region
        $region17: #{tpu_custom_call.1} parent=11 // pred_check
          %p161 = pneg %p85
        $region18: #{tpu_custom_call.1} parent=11 // pred_check_branch
          %163 = sbr.rel (%p161) target = $region20
        $region19: #{tpu_custom_call.1} parent=11 // pred_region
          _
        $region20: #{tpu_custom_call.1} parent=11 // pred_fallthru
          _
        // Predicated region
        $region21: #{tpu_custom_call.1} parent=11 // pred_check
          %p164 = pneg %p106
        $region22: #{tpu_custom_call.1} parent=11 // pred_check_branch
          %166 = sbr.rel (%p164) target = $region24
        $region23: #{tpu_custom_call.1} parent=11 // pred_region
          %168 = vsyncadd [#allocation6], 0
          %s170 = sshll.u32 %s3, 4
          %s171 = int_to_ptr.hbm [resolvable:$true] %s170
          %s172 = sshll.u32 [#allocation7], 4
          %s173 = int_to_ptr.vmem [resolvable:$true] %s172
          %175 = dma.hbm_to_vmem [thread:$0]  %s171, 128, %s173, [#allocation6]
        $region24: #{tpu_custom_call.1} parent=11 // pred_fallthru
          _
      $region12: #{tpu_custom_call.1} parent=5 // pred_fallthru
        _
      %p176 = scmp.lt.s32.totalorder %s17, 2
      // Predicated region
      $region25: #{tpu_custom_call.1} parent=5 // pred_check
        %p177 = pneg %p176
      $region26: #{tpu_custom_call.1} parent=5 // pred_check_branch
        %179 = sbr.rel (%p177) target = $region28
      $region27: #{tpu_custom_call.1} parent=5 // pred_region
        // Predicated region
        $region29: #{tpu_custom_call.1} parent=27 // pred_check
          %p180 = pneg %p37
        $region30: #{tpu_custom_call.1} parent=27 // pred_check_branch
          %182 = sbr.rel (%p180) target = $region32
        $region31: #{tpu_custom_call.1} parent=27 // pred_region
          %s183 = sand.u32 %s27, 1
          %s184 = scalar_lea.sflag [#allocation3], %s183
          %s185 = sand.u32 %s27, 1
          %s186 = smul.addr %s185, 48
          %s187 = scalar_lea.vmem [#allocation2], %s186
          %189 = vsyncadd %s184, 0
          %s190 = smul.addr %s17, 6
          %s191 = smul.addr %s190, 8
          %s192 = scalar_lea.hbm %s0, %s191
          %s194 = sshll.u32 %s192, 4
          %s195 = int_to_ptr.hbm [resolvable:$true] %s194
          %s196 = sshll.u32 %s187, 4
          %s197 = int_to_ptr.vmem [resolvable:$true] %s196
          %199 = dma.hbm_to_vmem [thread:$0]  %s195, 768, %s197, %s184
        $region32: #{tpu_custom_call.1} parent=27 // pred_fallthru
          _
      $region28: #{tpu_custom_call.1} parent=5 // pred_fallthru
        _
      %p200 = scmp.le.s32.totalorder 1, %s17
      %p201 = scmp.lt.s32.totalorder %s17, 3
      %p202 = pnand %p200, %p201
      %p203 = pneg %p202
      // Predicated region
      $region33: #{tpu_custom_call.1} parent=5 // pred_check
        _
      $region34: #{tpu_custom_call.1} parent=5 // pred_check_branch
        %205 = sbr.rel (%p202) target = $region36
      $region35: #{tpu_custom_call.1} parent=5 // pred_region
        %s206 = ssub.s32 %s17, 1
        %s207 = sand.u32 %s30, 1
        %s208 = scalar_lea.sflag [#allocation3], %s207
        %s209 = sand.u32 %s30, 1
        %s210 = smul.addr %s209, 48
        %s211 = scalar_lea.vmem [#allocation2], %s210
        // Predicated region
        $region37: #{tpu_custom_call.1} parent=35 // pred_check
          %p212 = pneg %p43
        $region38: #{tpu_custom_call.1} parent=35 // pred_check_branch
          %214 = sbr.rel (%p212) target = $region40
        $region39: #{tpu_custom_call.1} parent=35 // pred_region
          %216 = dma.done %s208, 768
        $region40: #{tpu_custom_call.1} parent=35 // pred_fallthru
          _
        // Predicated region
        $region41: #{tpu_custom_call.1} parent=35 // pred_check
          %p217 = pneg %p64
        $region42: #{tpu_custom_call.1} parent=35 // pred_check_branch
          %219 = sbr.rel (%p217) target = $region44
        $region43: #{tpu_custom_call.1} parent=35 // pred_region
          %221 = dma.done [#allocation6], 6144
        $region44: #{tpu_custom_call.1} parent=35 // pred_fallthru
          _
        // Predicated region
        $region45: #{tpu_custom_call.1} parent=35 // pred_check
          %p222 = pneg %p106
        $region46: #{tpu_custom_call.1} parent=35 // pred_check_branch
          %224 = sbr.rel (%p222) target = $region48
        $region47: #{tpu_custom_call.1} parent=35 // pred_region
          %226 = dma.done [#allocation6], 128
        $region48: #{tpu_custom_call.1} parent=35 // pred_fallthru
          _
        %s227 = sand.u32 %s30, 1
        %s228 = scalar_lea.sflag [#allocation3], %s227
        %s229 = sand.u32 %s30, 1
        %s230 = smul.addr %s229, 48
        %s231 = scalar_lea.vmem [#allocation2], %s230
        %p232 = pneg %p43
        %p233 = pneg %p40
        %p234 = pneg %p64
        %p235 = pneg %p61
        %p236 = pneg %p85
        %p237 = pneg %p82
        %p238 = pneg %p106
        %p239 = pneg %p103
        %p240 = pneg %p132
        %p241 = pneg %p129
        %s242 = sand.u32 %s119, 1
        %s243 = scalar_lea.sflag [#allocation4], %s242
        %s244 = sand.u32 %s119, 1
        %s245 = smul.addr %s244, 8
        %s246 = scalar_lea.vmem [#allocation8], %s245
        %v247 = vld [vmem:[%s211] sm:$0xff]
        %v248 = vld [vmem:[%s211 + $0x8] sm:$0xff]
        %v249 = vld [vmem:[%s211 + $0x10] sm:$0xff]
        %v250 = vld [vmem:[%s211 + $0x18] sm:$0xff]
        %v251 = vld [vmem:[%s211 + $0x20] sm:$0xff]
        %v252 = vld [vmem:[%s211 + $0x28] sm:$0xff]
        %v253 = vpack.c.bf16 %v247, %v247
        %v254 = vpack.c.bf16 %v248, %v248
        %v255 = vpack.c.bf16 %v249, %v249
        %v256 = vpack.c.bf16 %v250, %v250
        %v257 = vpack.c.bf16 %v251, %v251
        %v258 = vpack.c.bf16 %v252, %v252
        %v259 = vld [vmem:[#allocation5] sm:$0xf]
        %v260 = vld [vmem:[#allocation5 + $0x4] sm:$0xf]
        %v261 = vld [vmem:[#allocation5 + $0x8] sm:$0xf]
        %v262 = vld [vmem:[#allocation5 + $0xc] sm:$0xf]
        %v263 = vld [vmem:[#allocation5 + $0x10] sm:$0xf]
        %v264 = vld [vmem:[#allocation5 + $0x14] sm:$0xf]
        %v265 = vld [vmem:[#allocation5 + $0x18] sm:$0xf]
        %v266 = vld [vmem:[#allocation5 + $0x1c] sm:$0xf]
        %v267 = vld [vmem:[#allocation5 + $0x20] sm:$0xf]
        %v268 = vld [vmem:[#allocation5 + $0x24] sm:$0xf]
        %v269 = vld [vmem:[#allocation5 + $0x28] sm:$0xf]
        %v270 = vld [vmem:[#allocation5 + $0x2c] sm:$0xf]
        %v271 = vld [vmem:[#allocation5 + $0x30] sm:$0xf]
        %v272 = vld [vmem:[#allocation5 + $0x34] sm:$0xf]
        %v273 = vld [vmem:[#allocation5 + $0x38] sm:$0xf]
        %v274 = vld [vmem:[#allocation5 + $0x3c] sm:$0xf]
        %v275 = vld [vmem:[#allocation5 + $0x40] sm:$0xf]
        %v276 = vld [vmem:[#allocation5 + $0x44] sm:$0xf]
        %v277 = vld [vmem:[#allocation5 + $0x48] sm:$0xf]
        %v278 = vld [vmem:[#allocation5 + $0x4c] sm:$0xf]
        %v279 = vld [vmem:[#allocation5 + $0x50] sm:$0xf]
        %v280 = vld [vmem:[#allocation5 + $0x54] sm:$0xf]
        %v281 = vld [vmem:[#allocation5 + $0x58] sm:$0xf]
        %v282 = vld [vmem:[#allocation5 + $0x5c] sm:$0xf]
        %v283 = vld [vmem:[#allocation5 + $0x60] sm:$0xf]
        %v284 = vld [vmem:[#allocation5 + $0x64] sm:$0xf]
        %v285 = vld [vmem:[#allocation5 + $0x68] sm:$0xf]
        %v286 = vld [vmem:[#allocation5 + $0x6c] sm:$0xf]
        %v287 = vld [vmem:[#allocation5 + $0x70] sm:$0xf]
        %v288 = vld [vmem:[#allocation5 + $0x74] sm:$0xf]
        %v289 = vld [vmem:[#allocation5 + $0x78] sm:$0xf]
        %v290 = vld [vmem:[#allocation5 + $0x7c] sm:$0xf]
        %v291 = vld [vmem:[#allocation5 + $0x80] sm:$0xf]
        %v292 = vld [vmem:[#allocation5 + $0x84] sm:$0xf]
        %v293 = vld [vmem:[#allocation5 + $0x88] sm:$0xf]
        %v294 = vld [vmem:[#allocation5 + $0x8c] sm:$0xf]
        %v295 = vld [vmem:[#allocation5 + $0x90] sm:$0xf]
        %v296 = vld [vmem:[#allocation5 + $0x94] sm:$0xf]
        %v297 = vld [vmem:[#allocation5 + $0x98] sm:$0xf]
        %v298 = vld [vmem:[#allocation5 + $0x9c] sm:$0xf]
        %v299 = vld [vmem:[#allocation5 + $0xa0] sm:$0xf]
        %v300 = vld [vmem:[#allocation5 + $0xa4] sm:$0xf]
        %v301 = vld [vmem:[#allocation5 + $0xa8] sm:$0xf]
        %v302 = vld [vmem:[#allocation5 + $0xac] sm:$0xf]
        %v303 = vld [vmem:[#allocation5 + $0xb0] sm:$0xf]
        %v304 = vld [vmem:[#allocation5 + $0xb4] sm:$0xf]
        %v305 = vld [vmem:[#allocation5 + $0xb8] sm:$0xf]
        %v306 = vld [vmem:[#allocation5 + $0xbc] sm:$0xf]
        %v307 = vld [vmem:[#allocation5 + $0xc0] sm:$0xf]
        %v308 = vld [vmem:[#allocation5 + $0xc4] sm:$0xf]
        %v309 = vld [vmem:[#allocation5 + $0xc8] sm:$0xf]
        %v310 = vld [vmem:[#allocation5 + $0xcc] sm:$0xf]
        %v311 = vld [vmem:[#allocation5 + $0xd0] sm:$0xf]
        %v312 = vld [vmem:[#allocation5 + $0xd4] sm:$0xf]
        %v313 = vld [vmem:[#allocation5 + $0xd8] sm:$0xf]
        %v314 = vld [vmem:[#allocation5 + $0xdc] sm:$0xf]
        %v315 = vld [vmem:[#allocation5 + $0xe0] sm:$0xf]
        %v316 = vld [vmem:[#allocation5 + $0xe4] sm:$0xf]
        %v317 = vld [vmem:[#allocation5 + $0xe8] sm:$0xf]
        %v318 = vld [vmem:[#allocation5 + $0xec] sm:$0xf]
        %v319 = vld [vmem:[#allocation5 + $0xf0] sm:$0xf]
        %v320 = vld [vmem:[#allocation5 + $0xf4] sm:$0xf]
        %v321 = vld [vmem:[#allocation5 + $0xf8] sm:$0xf]
        %v322 = vld [vmem:[#allocation5 + $0xfc] sm:$0xf]
        %v323 = vld [vmem:[#allocation5 + $0x100] sm:$0xf]
        %v324 = vld [vmem:[#allocation5 + $0x104] sm:$0xf]
        %v325 = vld [vmem:[#allocation5 + $0x108] sm:$0xf]
        %v326 = vld [vmem:[#allocation5 + $0x10c] sm:$0xf]
        %v327 = vld [vmem:[#allocation5 + $0x110] sm:$0xf]
        %v328 = vld [vmem:[#allocation5 + $0x114] sm:$0xf]
        %v329 = vld [vmem:[#allocation5 + $0x118] sm:$0xf]
        %v330 = vld [vmem:[#allocation5 + $0x11c] sm:$0xf]
        %v331 = vld [vmem:[#allocation5 + $0x120] sm:$0xf]
        %v332 = vld [vmem:[#allocation5 + $0x124] sm:$0xf]
        %v333 = vld [vmem:[#allocation5 + $0x128] sm:$0xf]
        %v334 = vld [vmem:[#allocation5 + $0x12c] sm:$0xf]
        %v335 = vld [vmem:[#allocation5 + $0x130] sm:$0xf]
        %v336 = vld [vmem:[#allocation5 + $0x134] sm:$0xf]
        %v337 = vld [vmem:[#allocation5 + $0x138] sm:$0xf]
        %v338 = vld [vmem:[#allocation5 + $0x13c] sm:$0xf]
        %v339 = vld [vmem:[#allocation5 + $0x140] sm:$0xf]
        %v340 = vld [vmem:[#allocation5 + $0x144] sm:$0xf]
        %v341 = vld [vmem:[#allocation5 + $0x148] sm:$0xf]
        %v342 = vld [vmem:[#allocation5 + $0x14c] sm:$0xf]
        %v343 = vld [vmem:[#allocation5 + $0x150] sm:$0xf]
        %v344 = vld [vmem:[#allocation5 + $0x154] sm:$0xf]
        %v345 = vld [vmem:[#allocation5 + $0x158] sm:$0xf]
        %v346 = vld [vmem:[#allocation5 + $0x15c] sm:$0xf]
        %v347 = vld [vmem:[#allocation5 + $0x160] sm:$0xf]
        %v348 = vld [vmem:[#allocation5 + $0x164] sm:$0xf]
        %v349 = vld [vmem:[#allocation5 + $0x168] sm:$0xf]
        %v350 = vld [vmem:[#allocation5 + $0x16c] sm:$0xf]
        %v351 = vld [vmem:[#allocation5 + $0x170] sm:$0xf]
        %v352 = vld [vmem:[#allocation5 + $0x174] sm:$0xf]
        %v353 = vld [vmem:[#allocation5 + $0x178] sm:$0xf]
        %v354 = vld [vmem:[#allocation5 + $0x17c] sm:$0xf]
        %v355 = vld [vmem:[%s2] sm:$0x1]
        %v357 = vperm.slane %v355, 0
        %v455 = vunpack.c.l.b16 %v259
        %v456 = vunpack.c.l.b16 %v260
        %v457 = vunpack.c.l.b16 %v261
        %v458 = vunpack.c.l.b16 %v262
        %v459 = vunpack.c.l.b16 %v263
        %v460 = vunpack.c.l.b16 %v264
        %v461 = vunpack.c.l.b16 %v265
        %v462 = vunpack.c.l.b16 %v266
        %v463 = vunpack.c.l.b16 %v267
        %v464 = vunpack.c.l.b16 %v268
        %v465 = vunpack.c.l.b16 %v269
        %v466 = vunpack.c.l.b16 %v270
        %v467 = vunpack.c.l.b16 %v271
        %v468 = vunpack.c.l.b16 %v272
        %v469 = vunpack.c.l.b16 %v273
        %v470 = vunpack.c.l.b16 %v274
        %v471 = vunpack.c.l.b16 %v275
        %v472 = vunpack.c.l.b16 %v276
        %v473 = vunpack.c.l.b16 %v277
        %v474 = vunpack.c.l.b16 %v278
        %v475 = vunpack.c.l.b16 %v279
        %v476 = vunpack.c.l.b16 %v280
        %v477 = vunpack.c.l.b16 %v281
        %v478 = vunpack.c.l.b16 %v282
        %v479 = vunpack.c.l.b16 %v283
        %v480 = vunpack.c.l.b16 %v284
        %v481 = vunpack.c.l.b16 %v285
        %v482 = vunpack.c.l.b16 %v286
        %v483 = vunpack.c.l.b16 %v287
        %v484 = vunpack.c.l.b16 %v288
        %v485 = vunpack.c.l.b16 %v289
        %v486 = vunpack.c.l.b16 %v290
        %v487 = vunpack.c.l.b16 %v291
        %v488 = vunpack.c.l.b16 %v292
        %v489 = vunpack.c.l.b16 %v293
        %v490 = vunpack.c.l.b16 %v294
        %v491 = vunpack.c.l.b16 %v295
        %v492 = vunpack.c.l.b16 %v296
        %v493 = vunpack.c.l.b16 %v297
        %v494 = vunpack.c.l.b16 %v298
        %v495 = vunpack.c.l.b16 %v299
        %v496 = vunpack.c.l.b16 %v300
        %v497 = vunpack.c.l.b16 %v301
        %v498 = vunpack.c.l.b16 %v302
        %v499 = vunpack.c.l.b16 %v303
        %v500 = vunpack.c.l.b16 %v304
        %v501 = vunpack.c.l.b16 %v305
        %v502 = vunpack.c.l.b16 %v306
        %v503 = vunpack.c.l.b16 %v307
        %v504 = vunpack.c.l.b16 %v308
        %v505 = vunpack.c.l.b16 %v309
        %v506 = vunpack.c.l.b16 %v310
        %v507 = vunpack.c.l.b16 %v311
        %v508 = vunpack.c.l.b16 %v312
        %v509 = vunpack.c.l.b16 %v313
        %v510 = vunpack.c.l.b16 %v314
        %v511 = vunpack.c.l.b16 %v315
        %v512 = vunpack.c.l.b16 %v316
        %v513 = vunpack.c.l.b16 %v317
        %v514 = vunpack.c.l.b16 %v318
        %v515 = vunpack.c.l.b16 %v319
        %v516 = vunpack.c.l.b16 %v320
        %v517 = vunpack.c.l.b16 %v321
        %v518 = vunpack.c.l.b16 %v322
        %v519 = vunpack.c.l.b16 %v323
        %v520 = vunpack.c.l.b16 %v324
        %v521 = vunpack.c.l.b16 %v325
        %v522 = vunpack.c.l.b16 %v326
        %v523 = vunpack.c.l.b16 %v327
        %v524 = vunpack.c.l.b16 %v328
        %v525 = vunpack.c.l.b16 %v329
        %v526 = vunpack.c.l.b16 %v330
        %v527 = vunpack.c.l.b16 %v331
        %v528 = vunpack.c.l.b16 %v332
        %v529 = vunpack.c.l.b16 %v333
        %v530 = vunpack.c.l.b16 %v334
        %v531 = vunpack.c.l.b16 %v335
        %v532 = vunpack.c.l.b16 %v336
        %v533 = vunpack.c.l.b16 %v337
        %v534 = vunpack.c.l.b16 %v338
        %v535 = vunpack.c.l.b16 %v339
        %v536 = vunpack.c.l.b16 %v340
        %v537 = vunpack.c.l.b16 %v341
        %v538 = vunpack.c.l.b16 %v342
        %v539 = vunpack.c.l.b16 %v343
        %v540 = vunpack.c.l.b16 %v344
        %v541 = vunpack.c.l.b16 %v345
        %v542 = vunpack.c.l.b16 %v346
        %v543 = vunpack.c.l.b16 %v347
        %v544 = vunpack.c.l.b16 %v348
        %v545 = vunpack.c.l.b16 %v349
        %v546 = vunpack.c.l.b16 %v350
        %v547 = vunpack.c.l.b16 %v351
        %v548 = vunpack.c.l.b16 %v352
        %v549 = vunpack.c.l.b16 %v353
        %v550 = vunpack.c.l.b16 %v354
        %v551 = vpack.c.b16 %v456, %v455
        %v552 = vpack.c.b16 %v458, %v457
        %v553 = vpack.c.b16 %v460, %v459
        %v554 = vpack.c.b16 %v462, %v461
        %v555 = vpack.c.b16 %v464, %v463
        %v556 = vpack.c.b16 %v466, %v465
        %v557 = vpack.c.b16 %v468, %v467
        %v558 = vpack.c.b16 %v470, %v469
        %v559 = vpack.c.b16 %v472, %v471
        %v560 = vpack.c.b16 %v474, %v473
        %v561 = vpack.c.b16 %v476, %v475
        %v562 = vpack.c.b16 %v478, %v477
        %v563 = vpack.c.b16 %v480, %v479
        %v564 = vpack.c.b16 %v482, %v481
        %v565 = vpack.c.b16 %v484, %v483
        %v566 = vpack.c.b16 %v486, %v485
        %v567 = vpack.c.b16 %v488, %v487
        %v568 = vpack.c.b16 %v490, %v489
        %v569 = vpack.c.b16 %v492, %v491
        %v570 = vpack.c.b16 %v494, %v493
        %v571 = vpack.c.b16 %v496, %v495
        %v572 = vpack.c.b16 %v498, %v497
        %v573 = vpack.c.b16 %v500, %v499
        %v574 = vpack.c.b16 %v502, %v501
        %v575 = vpack.c.b16 %v504, %v503
        %v576 = vpack.c.b16 %v506, %v505
        %v577 = vpack.c.b16 %v508, %v507
        %v578 = vpack.c.b16 %v510, %v509
        %v579 = vpack.c.b16 %v512, %v511
        %v580 = vpack.c.b16 %v514, %v513
        %v581 = vpack.c.b16 %v516, %v515
        %v582 = vpack.c.b16 %v518, %v517
        %v583 = vpack.c.b16 %v520, %v519
        %v584 = vpack.c.b16 %v522, %v521
        %v585 = vpack.c.b16 %v524, %v523
        %v586 = vpack.c.b16 %v526, %v525
        %v587 = vpack.c.b16 %v528, %v527
        %v588 = vpack.c.b16 %v530, %v529
        %v589 = vpack.c.b16 %v532, %v531
        %v590 = vpack.c.b16 %v534, %v533
        %v591 = vpack.c.b16 %v536, %v535
        %v592 = vpack.c.b16 %v538, %v537
        %v593 = vpack.c.b16 %v540, %v539
        %v594 = vpack.c.b16 %v542, %v541
        %v595 = vpack.c.b16 %v544, %v543
        %v596 = vpack.c.b16 %v546, %v545
        %v597 = vpack.c.b16 %v548, %v547
        %v598 = vpack.c.b16 %v550, %v549
        %647 = vmatpush.bf16.msra.mxu0 %v558
        %648 = vmatpush.bf16.msra.mxu0 %v557
        %649 = vmatpush.bf16.msra.mxu0 %v556
        %650 = vmatpush.bf16.msra.mxu0 %v555
        %651 = vmatpush.bf16.msra.mxu0 %v554
        %652 = vmatpush.bf16.msra.mxu0 %v553
        %653 = vmatpush.bf16.msra.mxu0 %v552
        %654 = vmatpush.bf16.msra.mxu0 %v551
        %655 = vmatmul.bf16.gmra.mxu0 %v253
        %v656 = vpop.f32.mrf.mxu0
        %v657 = vadd.f32 %v357, %v656
        %v658 = vpop.f32.mrf.mxu0
        %659 = vdwg.mxu0
        %660 = vmatpush.bf16.msra.mxu0 %v566
        %661 = vmatpush.bf16.msra.mxu0 %v565
        %662 = vmatpush.bf16.msra.mxu0 %v564
        %663 = vmatpush.bf16.msra.mxu0 %v563
        %664 = vmatpush.bf16.msra.mxu0 %v562
        %665 = vmatpush.bf16.msra.mxu0 %v561
        %666 = vmatpush.bf16.msra.mxu0 %v560
        %667 = vmatpush.bf16.msra.mxu0 %v559
        %668 = vmatmul.bf16.gmra.mxu0 %v254
        %v669 = vpop.f32.mrf.mxu0
        %v670 = vadd.f32 %v657, %v669
        %v671 = vpop.f32.mrf.mxu0
        %672 = vdwg.mxu0
        %673 = vmatpush.bf16.msra.mxu0 %v574
        %674 = vmatpush.bf16.msra.mxu0 %v573
        %675 = vmatpush.bf16.msra.mxu0 %v572
        %676 = vmatpush.bf16.msra.mxu0 %v571
        %677 = vmatpush.bf16.msra.mxu0 %v570
        %678 = vmatpush.bf16.msra.mxu0 %v569
        %679 = vmatpush.bf16.msra.mxu0 %v568
        %680 = vmatpush.bf16.msra.mxu0 %v567
        %681 = vmatmul.bf16.gmra.mxu0 %v255
        %v682 = vpop.f32.mrf.mxu0
        %v683 = vadd.f32 %v670, %v682
        %v684 = vpop.f32.mrf.mxu0
        %685 = vdwg.mxu0
        %686 = vmatpush.bf16.msra.mxu0 %v582
        %687 = vmatpush.bf16.msra.mxu0 %v581
        %688 = vmatpush.bf16.msra.mxu0 %v580
        %689 = vmatpush.bf16.msra.mxu0 %v579
        %690 = vmatpush.bf16.msra.mxu0 %v578
        %691 = vmatpush.bf16.msra.mxu0 %v577
        %692 = vmatpush.bf16.msra.mxu0 %v576
        %693 = vmatpush.bf16.msra.mxu0 %v575
        %694 = vmatmul.bf16.gmra.mxu0 %v256
        %v695 = vpop.f32.mrf.mxu0
        %v696 = vadd.f32 %v683, %v695
        %v697 = vpop.f32.mrf.mxu0
        %698 = vdwg.mxu0
        %699 = vmatpush.bf16.msra.mxu0 %v590
        %700 = vmatpush.bf16.msra.mxu0 %v589
        %701 = vmatpush.bf16.msra.mxu0 %v588
        %702 = vmatpush.bf16.msra.mxu0 %v587
        %703 = vmatpush.bf16.msra.mxu0 %v586
        %704 = vmatpush.bf16.msra.mxu0 %v585
        %705 = vmatpush.bf16.msra.mxu0 %v584
        %706 = vmatpush.bf16.msra.mxu0 %v583
        %707 = vmatmul.bf16.gmra.mxu0 %v257
        %v708 = vpop.f32.mrf.mxu0
        %v709 = vadd.f32 %v696, %v708
        %v710 = vpop.f32.mrf.mxu0
        %711 = vdwg.mxu0
        %712 = vmatpush.bf16.msra.mxu0 %v598
        %713 = vmatpush.bf16.msra.mxu0 %v597
        %714 = vmatpush.bf16.msra.mxu0 %v596
        %715 = vmatpush.bf16.msra.mxu0 %v595
        %716 = vmatpush.bf16.msra.mxu0 %v594
        %717 = vmatpush.bf16.msra.mxu0 %v593
        %718 = vmatpush.bf16.msra.mxu0 %v592
        %719 = vmatpush.bf16.msra.mxu0 %v591
        %720 = vmatmul.bf16.gmra.mxu0 %v258
        %v721 = vpop.f32.mrf.mxu0
        %v722 = vadd.f32 %v709, %v721
        %v723 = vpop.f32.mrf.mxu0
        %724 = vdwg.mxu0
        %v725 = vld [vmem:[#allocation7] sm:$0xff]
        %v726 = vadd.f32 %v722, %v725
        %727 = vst [vmem:[%s246] sm:$0xff] %v726
        %s728 = sand.u32 %s119, 1
        %s729 = scalar_lea.sflag [#allocation4], %s728
        %s730 = sand.u32 %s119, 1
        %s731 = smul.addr %s730, 8
        %s732 = scalar_lea.vmem [#allocation8], %s731
        // Predicated region
        $region49: #{tpu_custom_call.1} parent=35 // pred_check
          %p733 = pneg %p129
        $region50: #{tpu_custom_call.1} parent=35 // pred_check_branch
          %735 = sbr.rel (%p733) target = $region52
        $region51: #{tpu_custom_call.1} parent=35 // pred_region
          %737 = vsyncadd %s729, 0
          %s738 = smul.addr %s22, 8
          %s739 = scalar_lea.hbm %s4, %s738
          %s741 = sshll.u32 %s732, 4
          %s742 = int_to_ptr.vmem [resolvable:$true] %s741
          %s743 = sshll.u32 %s739, 4
          %s744 = int_to_ptr.hbm [resolvable:$true] %s743
          %746 = dma.vmem_to_hbm [thread:$0]  %s742, 128, %s744, %s729
        $region52: #{tpu_custom_call.1} parent=35 // pred_fallthru
          _
      $region36: #{tpu_custom_call.1} parent=5 // pred_fallthru
        _
      %p747 = scmp.le.s32.totalorder 2, %s17
      // Predicated region
      $region53: #{tpu_custom_call.1} parent=5 // pred_check
        %p748 = pneg %p747
      $region54: #{tpu_custom_call.1} parent=5 // pred_check_branch
        %750 = sbr.rel (%p748) target = $region56
      $region55: #{tpu_custom_call.1} parent=5 // pred_region
        %s751 = ssub.s32 %s17, 2
        // Predicated region
        $region57: #{tpu_custom_call.1} parent=55 // pred_check
          %p752 = pneg %p135
        $region58: #{tpu_custom_call.1} parent=55 // pred_check_branch
          %754 = sbr.rel (%p752) target = $region60
        $region59: #{tpu_custom_call.1} parent=55 // pred_region
          %s755 = sand.u32 %s120, 1
          %s756 = scalar_lea.sflag [#allocation4], %s755
          %s757 = sand.u32 %s120, 1
          %s758 = smul.addr %s757, 8
          %s759 = scalar_lea.vmem [#allocation8], %s758
          %761 = dma.done %s756, 128
        $region60: #{tpu_custom_call.1} parent=55 // pred_fallthru
          _
      $region56: #{tpu_custom_call.1} parent=5 // pred_fallthru
        _
    $region6: #{tpu_custom_call.1} parent=1 // loop_footer
      %s21 = sadd.s32 1, %s17
    $region7: #{tpu_custom_call.1} parent=1 // loop_footer_branch
      %16 = sbr.rel target = $region3
    $region8: #{tpu_custom_call.1} parent=1 // loop_exit
      _
    %762 = vsyncpa [#allocation3], 1
    %s763 = scalar_lea.sflag [#allocation3], 1
    %764 = vsyncpa %s763, 1
    %765 = vsyncpa [#allocation6], 1
    %766 = vsyncpa [#allocation4], 1
    %s767 = scalar_lea.sflag [#allocation4], 1
    %768 = vsyncpa %s767, 1

</llo_original>
